<compile_context>
chip_gen: v5e
topology: v5e:2x2
jax: 0.10.0
libtpu: 0.0.40
codegen_flags: <defaults>
</compile_context>

<pallas_src>
import jax
import jax.numpy as jnp
from jax import lax
from jax.experimental import pallas as pl
from jax.experimental.pallas import tpu as pltpu

LANES = 128


# ----------------------------------------------------------------------------
# Fused whole-TCN kernel: one grid step per batch tile.
# ----------------------------------------------------------------------------
def _make_tcn_kernel(Bt, T, K, C, layer_cfg, PAD8, compute_dtype):
    L = len(layer_cfg)
    M = Bt * T
    f32 = jnp.float32

    def kernel(x_ref, wconv_ref, bconv_ref, wmisc_ref, bmisc_ref,
               out_ref, act_ref, hid_ref, pk_ref):
        # --- per-grid-step init (NOT gated on program_id: parallel-grid safe).
        # Only the 2*PAD8 time-pad border rows are zeroed; the interiors are
        # fully rewritten every layer so they never need clearing.
        if PAD8 > 0:
            zb = jnp.zeros((Bt, PAD8, C), f32)
            act_ref[:, :PAD8, :] = zb
            act_ref[:, PAD8 + T:, :] = zb
            hid_ref[:, :PAD8, :] = zb
            hid_ref[:, PAD8 + T:, :] = zb
        # Packed-LHS scratch must start clean: lanes beyond K*cin multiply zero
        # weight rows, but stale NaNs left in VMEM would still poison the dot.
        pk_ref[...] = jnp.zeros_like(pk_ref)

        # Load this batch tile into the interior of the padded activation.
        act_ref[:, PAD8:PAD8 + T, :] = x_ref[...].astype(f32)

        def packed_conv(src_ref, cin, dil, pad, w, b):
            # Pack the K dilated taps into the contraction lanes:
            #   pk[b, t, k*cin + c] = src[b, t + k*dil - pad, c]
            # so the whole conv is ONE (M,128)@(128,128) MXU dot instead of
            # K dots + (K-1) VALU adds.  All slice offsets are static.
            for k in range(K):
                off = PAD8 - pad + k * dil
                pk_ref[:, :, k * cin:(k + 1) * cin] = src_ref[:, off:off + T, :cin]
            lhs = pk_ref[...].reshape(M, C).astype(compute_dtype)
            return jnp.dot(lhs, w, preferred_element_type=f32) + b

        for l, (dil, pad, cin, cout, has_ds) in enumerate(layer_cfg):
            w1 = wconv_ref[l, 0].astype(compute_dtype)
            w2 = wconv_ref[l, 1].astype(compute_dtype)
            b1 = bconv_ref[l, 0]
            b2 = bconv_ref[l, 1]

            # conv1 -> relu      (dropout1 = identity at eval time)
            h = jnp.maximum(packed_conv(act_ref, cin, dil, pad, w1, b1), 0.0)
            hid_ref[:, PAD8:PAD8 + T, :] = h.reshape(Bt, T, C)
            # conv2 -> relu      (dropout2 = identity at eval time)
            o = jnp.maximum(packed_conv(hid_ref, cout, dil, pad, w2, b2), 0.0)
            # residual (identity or 1x1 downsample conv) + final relu
            y = act_ref[:, PAD8:PAD8 + T, :].reshape(M, C)
            if has_ds:
                res = jnp.dot(y.astype(compute_dtype),
                              wmisc_ref[l].astype(compute_dtype),
                              preferred_element_type=f32) + bmisc_ref[l]
            else:
                res = y
            act_ref[:, PAD8:PAD8 + T, :] = (
                jnp.maximum(o + res, 0.0).reshape(Bt, T, C))

        # Final nn.Linear: one more lane-dense (M,128)@(128,128) dot.
        y = act_ref[:, PAD8:PAD8 + T, :].reshape(M, C)
        out = jnp.dot(y.astype(compute_dtype),
                      wmisc_ref[L].astype(compute_dtype),
                      preferred_element_type=f32) + bmisc_ref[L]
        out_ref[...] = out.reshape(Bt, T, C).astype(out_ref.dtype)

    return kernel


def _pad_to(a, shape, dtype=jnp.float32):
    """Zero-pad array `a` into the top-left corner of `shape`."""
    out = jnp.zeros(shape, dtype)
    return out.at[tuple(slice(0, s) for s in a.shape)].set(a.astype(dtype))


def tcn_forward(x, blocks, linear, kernel_size, *, b_tile=None,
                compute_dtype=jnp.float32):
    """x: (B, T, input_size) — returns (B, T, output_size)."""
    B, T, input_size = x.shape
    L = len(blocks)
    K = kernel_size
    C = LANES
    out_size = linear["b"].shape[0]

    # Fold the whole batch into the matmul M dimension by default (single grid
    # step -> no per-step overhead on single-TC v5e/v6e).  On v7x set
    # b_tile = B // 2 so the 2-way "parallel" grid feeds both TensorCores.
    if b_tile is None:
        b_tile = B
    assert B % b_tile == 0, "b_tile must divide B"
    nb = B // b_tile

    couts = [int(blk["b1"].shape[0]) for blk in blocks]
    cins = [input_size] + couts[:-1]
    dilations = [2 ** i for i in range(L)]
    paddings = [(K - 1) * d // 2 for d in dilations]
    for d in dilations:  # module only preserves length when (K-1)*d is even
        assert (K - 1) * d % 2 == 0, "length-preserving only when (K-1)*d even"
    assert max([input_size, out_size] + couts) <= C
    # TODO(synk): fall back to per-tap accumulation when K*channels > 128 lanes.
    assert K * max(cins + couts) <= C, "tap packing needs K*channels <= 128"

    max_pad = max(paddings)
    PAD8 = ((max_pad + 7) // 8) * 8            # sublane-aligned interior start
    Tp = T + 2 * PAD8
    has_ds = [("wd" in blk) for blk in blocks]
    layer_cfg = tuple(zip(dilations, paddings, cins, couts, has_ds))

    # --- glue: consolidate every weight/bias into 4 stacked operands ---------
    wdt = compute_dtype
    w_conv, b_conv, w_misc, b_misc = [], [], [], []
    for l, blk in enumerate(blocks):
        cin, cout = cins[l], couts[l]
        w_conv.append(jnp.stack([
            _pad_to(blk["w1"].reshape(K * cin, cout), (C, C), wdt),   # packed taps
            _pad_to(blk["w2"].reshape(K * cout, cout), (C, C), wdt)]))
        b_conv.append(jnp.stack([
            _pad_to(blk["b1"].reshape(1, -1), (1, C)),
            _pad_to(blk["b2"].reshape(1, -1), (1, C))]))
        if has_ds[l]:
            w_misc.append(_pad_to(blk["wd"][0], (C, C), wdt))
            b_misc.append(_pad_to(blk["bd"].reshape(1, -1), (1, C)))
        else:
            w_misc.append(jnp.zeros((C, C), wdt))
            b_misc.append(jnp.zeros((1, C), jnp.float32))
    w_misc.append(_pad_to(linear["w"][0], (C, C), wdt))
    b_misc.append(_pad_to(linear["b"].reshape(1, -1), (1, C)))
    w_conv = jnp.stack(w_conv)            # (L,   2, C, C)
    b_conv = jnp.stack(b_conv)            # (L,   2, 1, C)
    w_misc = jnp.stack(w_misc)            # (L+1, C, C)
    b_misc = jnp.stack(b_misc)            # (L+1, 1, C)

    # Lane-pad the input once; zeros above input_size keep the in-kernel
    # "lanes >= real channels are zero" invariant.
    x_p = _pad_to(x, (B, T, C))

    kernel = _make_tcn_kernel(b_tile, T, K, C, layer_cfg, PAD8, compute_dtype)

    out = pl.pallas_call(
        kernel,
        out_shape=jax.ShapeDtypeStruct((B, T, C), jnp.float32),
        grid=(nb,),
        in_specs=[
            pl.BlockSpec((b_tile, T, C), lambda i: (i, 0, 0)),
            pl.BlockSpec((L, 2, C, C), lambda i: (0, 0, 0, 0)),     # const idx:
            pl.BlockSpec((L, 2, 1, C), lambda i: (0, 0, 0, 0)),     # weights are
            pl.BlockSpec((L + 1, C, C), lambda i: (0, 0, 0)),       # DMA'd once
            pl.BlockSpec((L + 1, 1, C), lambda i: (0, 0, 0)),
        ],
        out_specs=pl.BlockSpec((b_tile, T, C), lambda i: (i, 0, 0)),
        scratch_shapes=[
            pltpu.VMEM((b_tile, Tp, C), jnp.float32),   # padded layer input
            pltpu.VMEM((b_tile, Tp, C), jnp.float32),   # padded conv1 output
            pltpu.VMEM((b_tile, T, C), jnp.float32),    # packed-taps LHS
        ],
        compiler_params=pltpu.CompilerParams(
            dimension_semantics=("parallel",)),
    )(x_p, w_conv, b_conv, w_misc, b_misc)
    # Lane-dense 128-wide store in-kernel; slice back to the real output width.
    return out[..., :out_size]


# ----------------------------------------------------------------------------
# Parameter initialization (deterministic, synthetic).
# ----------------------------------------------------------------------------
def _weight_norm_effective(key, cout, cin, ksz):
    """Effective weight of torch.nn.utils.weight_norm(Conv1d): g * v / ||v||."""
    kv, kg = jax.random.split(key)
    v = 0.01 * jax.random.normal(kv, (cout, cin, ksz), jnp.float32)
    g = 1.0 + 0.1 * jax.random.normal(kg, (cout,), jnp.float32)
    norm = jnp.sqrt(jnp.sum(v * v, axis=(1, 2), keepdims=True)) + 1e-12
    w = g[:, None, None] * v / norm                  # (Cout, Cin, K) torch layout
    return jnp.transpose(w, (2, 1, 0))               # -> (K, Cin, Cout)


def init_tcn_params(key, input_size, output_size, num_channels, kernel_size):
    blocks = []
    for i, cout in enumerate(num_channels):
        cin = input_size if i == 0 else num_channels[i - 1]
        key, k1, k2, kd, kb1, kb2, kbd = jax.random.split(key, 7)
        blk = {
            "w1": _weight_norm_effective(k1, cout, cin, kernel_size),
            "b1": 0.01 * jax.random.normal(kb1, (cout,), jnp.float32),
            "w2": _weight_norm_effective(k2, cout, cout, kernel_size),
            "b2": 0.01 * jax.random.normal(kb2, (cout,), jnp.float32),
        }
        if cin != cout:  # downsample 1x1 conv
            wd = 0.01 * jax.random.normal(kd, (cout, cin, 1), jnp.float32)
            blk["wd"] = jnp.transpose(wd, (2, 1, 0))  # (1, Cin, Cout)
            blk["bd"] = 0.01 * jax.random.normal(kbd, (cout,), jnp.float32)
        blocks.append(blk)
    key, kw, kb = jax.random.split(key, 3)
    wl = 0.01 * jax.random.normal(kw, (output_size, num_channels[-1]), jnp.float32)
    bl = 0.01 * jax.random.normal(kb, (output_size,), jnp.float32)
    linear = {"w": jnp.transpose(wl)[None, :, :],    # (1, C_last, output_size)
              "b": bl}
    return blocks, linear


# ----------------------------------------------------------------------------
# Plain-JAX reference for validation (same semantics as the PyTorch module).
# ----------------------------------------------------------------------------
def _conv1d_ref(x, w, bias, dilation, padding):
    xpad = jnp.pad(x, ((0, 0), (padding, padding), (0, 0)))
    K = w.shape[0]
    T = x.shape[1]
    acc = jnp.broadcast_to(bias, (x.shape[0], T, w.shape[-1])).astype(jnp.float32)
    for k in range(K):
        xs = lax.dynamic_slice_in_dim(xpad, k * dilation, T, axis=1)
        acc = acc + jnp.einsum("btc,cd->btd", xs, w[k])
    return acc


def tcn_forward_ref(x, blocks, linear, kernel_size):
    y = x
    for i, blk in enumerate(blocks):
        dilation = 2 ** i
        padding = (kernel_size - 1) * dilation // 2
        out = jnp.maximum(_conv1d_ref(y, blk["w1"], blk["b1"], dilation, padding), 0.0)
        out = jnp.maximum(_conv1d_ref(out, blk["w2"], blk["b2"], dilation, padding), 0.0)
        res = _conv1d_ref(y, blk["wd"], blk["bd"], 1, 0) if "wd" in blk else y
        y = jnp.maximum(out + res, 0.0)
    return _conv1d_ref(y, linear["w"], linear["b"], 1, 0)


# ----------------------------------------------------------------------------
if __name__ == "__main__":
    # Small config: TCN(input_size=8, output_size=4, num_channels=[16, 16], k=3)
    input_size, output_size = 8, 4
    num_channels = (16, 16)
    kernel_size = 3
    B, T = 2, 16

    key = jax.random.PRNGKey(0)
    kx, kp = jax.random.split(key)
    x = jax.random.normal(kx, (B, T, input_size), jnp.float32)  # (B, T, input_size)

    blocks, linear = init_tcn_params(kp, input_size, output_size,
                                     num_channels, kernel_size)

    y_ref = tcn_forward_ref(x, blocks, linear, kernel_size)

    # Default: whole batch folded into one grid step (best on v5e/v6e).
    y = tcn_forward(x, blocks, linear, kernel_size)
    y = jax.block_until_ready(y)
    assert y.shape == (B, T, output_size)
    assert jnp.allclose(y, y_ref, atol=1e-5, rtol=1e-5), "mismatch vs JAX reference"

    # v7x-style split: 2-way parallel grid, B/2 batch elements per step.
    y2 = tcn_forward(x, blocks, linear, kernel_size, b_tile=B // 2)
    y2 = jax.block_until_ready(y2)
    assert jnp.allclose(y2, y_ref, atol=1e-5, rtol=1e-5), "mismatch (b_tile=B//2)"

    print("KERNEL_OK")
</pallas_src>

<mosaic_0001>
module attributes {stable_mosaic.version = 11 : i64} {
  func.func @kernel(%arg0: i32, %arg1: memref<2x16x128xf32, #tpu.memory_space<vmem>>, %arg2: memref<2x2x128x128xf32, #tpu.memory_space<vmem>>, %arg3: memref<2x2x1x128xf32, #tpu.memory_space<vmem>>, %arg4: memref<3x128x128xf32, #tpu.memory_space<vmem>>, %arg5: memref<3x1x128xf32, #tpu.memory_space<vmem>>, %arg6: memref<2x16x128xf32, #tpu.memory_space<vmem>>, %arg7: memref<2x32x128xf32, #tpu.memory_space<vmem>>, %arg8: memref<2x32x128xf32, #tpu.memory_space<vmem>>, %arg9: memref<2x16x128xf32, #tpu.memory_space<vmem>>) attributes {dimension_semantics = [#tpu.dimension_semantics<parallel>], iteration_bounds = array<i64: 1>, scalar_prefetch = 0 : i64, scratch_operands = 3 : i64, tpu.core_type = #tpu.core_type<tc>, window_params = [{transform_indices = @transform_0, window_bounds = array<i64: 2, 16, 128>}, {pipeline_mode = #tpu.pipeline_mode<synchronous>, transform_indices = @transform_1, window_bounds = array<i64: 2, 2, 128, 128>}, {pipeline_mode = #tpu.pipeline_mode<synchronous>, transform_indices = @transform_2, window_bounds = array<i64: 2, 2, 1, 128>}, {pipeline_mode = #tpu.pipeline_mode<synchronous>, transform_indices = @transform_3, window_bounds = array<i64: 3, 128, 128>}, {pipeline_mode = #tpu.pipeline_mode<synchronous>, transform_indices = @transform_4, window_bounds = array<i64: 3, 1, 128>}, {transform_indices = @transform_5, window_bounds = array<i64: 2, 16, 128>}]} {
    %cst = arith.constant 0.000000e+00 : f32
    %0 = vector.broadcast %cst : f32 to vector<2x8x128xf32>
    %c0 = arith.constant 0 : index
    %c0_0 = arith.constant 0 : index
    %c0_1 = arith.constant 0 : index
    %1 = vector.load %arg7[%c0, %c0_0, %c0_1] : memref<2x32x128xf32, #tpu.memory_space<vmem>>, vector<2x8x128xf32>
    tpu.vector_store %arg7[%c0, %c0_0, %c0_1], %0 {strides = array<i32>} : memref<2x32x128xf32, #tpu.memory_space<vmem>>, vector<2x8x128xf32>,
    %c0_2 = arith.constant 0 : index
    %c24 = arith.constant 24 : index
    %c0_3 = arith.constant 0 : index
    %2 = vector.load %arg7[%c0_2, %c24, %c0_3] : memref<2x32x128xf32, #tpu.memory_space<vmem>>, vector<2x8x128xf32>
    tpu.vector_store %arg7[%c0_2, %c24, %c0_3], %0 {strides = array<i32>} : memref<2x32x128xf32, #tpu.memory_space<vmem>>, vector<2x8x128xf32>,
    %c0_4 = arith.constant 0 : index
    %c0_5 = arith.constant 0 : index
    %c0_6 = arith.constant 0 : index
    %3 = vector.load %arg8[%c0_4, %c0_5, %c0_6] : memref<2x32x128xf32, #tpu.memory_space<vmem>>, vector<2x8x128xf32>
    tpu.vector_store %arg8[%c0_4, %c0_5, %c0_6], %0 {strides = array<i32>} : memref<2x32x128xf32, #tpu.memory_space<vmem>>, vector<2x8x128xf32>,
    %c0_7 = arith.constant 0 : index
    %c24_8 = arith.constant 24 : index
    %c0_9 = arith.constant 0 : index
    %4 = vector.load %arg8[%c0_7, %c24_8, %c0_9] : memref<2x32x128xf32, #tpu.memory_space<vmem>>, vector<2x8x128xf32>
    tpu.vector_store %arg8[%c0_7, %c24_8, %c0_9], %0 {strides = array<i32>} : memref<2x32x128xf32, #tpu.memory_space<vmem>>, vector<2x8x128xf32>,
    %cst_10 = arith.constant 0.000000e+00 : f32
    %5 = vector.broadcast %cst_10 : f32 to vector<2x16x128xf32>
    %c0_11 = arith.constant 0 : index
    %c0_12 = arith.constant 0 : index
    %c0_13 = arith.constant 0 : index
    %6 = vector.load %arg9[%c0_11, %c0_12, %c0_13] : memref<2x16x128xf32, #tpu.memory_space<vmem>>, vector<2x16x128xf32>
    tpu.vector_store %arg9[%c0_11, %c0_12, %c0_13], %5 {strides = array<i32>} : memref<2x16x128xf32, #tpu.memory_space<vmem>>, vector<2x16x128xf32>,
    %c0_14 = arith.constant 0 : index
    %c0_15 = arith.constant 0 : index
    %c0_16 = arith.constant 0 : index
    %7 = vector.load %arg1[%c0_14, %c0_15, %c0_16] : memref<2x16x128xf32, #tpu.memory_space<vmem>>, vector<2x16x128xf32>
    %c0_17 = arith.constant 0 : index
    %c8 = arith.constant 8 : index
    %c0_18 = arith.constant 0 : index
    %8 = vector.load %arg7[%c0_17, %c8, %c0_18] : memref<2x32x128xf32, #tpu.memory_space<vmem>>, vector<2x16x128xf32>
    tpu.vector_store %arg7[%c0_17, %c8, %c0_18], %7 {strides = array<i32>} : memref<2x32x128xf32, #tpu.memory_space<vmem>>, vector<2x16x128xf32>,
    %c0_19 = arith.constant 0 : index
    %c0_20 = arith.constant 0 : index
    %c0_21 = arith.constant 0 : index
    %c0_22 = arith.constant 0 : index
    %9 = vector.load %arg2[%c0_19, %c0_20, %c0_21, %c0_22] : memref<2x2x128x128xf32, #tpu.memory_space<vmem>>, vector<1x1x128x128xf32>
    %10 = vector.shape_cast %9 : vector<1x1x128x128xf32> to vector<128x128xf32>
    %c0_23 = arith.constant 0 : index
    %c1 = arith.constant 1 : index
    %c0_24 = arith.constant 0 : index
    %c0_25 = arith.constant 0 : index
    %11 = vector.load %arg2[%c0_23, %c1, %c0_24, %c0_25] : memref<2x2x128x128xf32, #tpu.memory_space<vmem>>, vector<1x1x128x128xf32>
    %12 = vector.shape_cast %11 : vector<1x1x128x128xf32> to vector<128x128xf32>
    %c0_26 = arith.constant 0 : index
    %c0_27 = arith.constant 0 : index
    %c0_28 = arith.constant 0 : index
    %c0_29 = arith.constant 0 : index
    %13 = vector.load %arg3[%c0_26, %c0_27, %c0_28, %c0_29] : memref<2x2x1x128xf32, #tpu.memory_space<vmem>>, vector<1x1x1x128xf32>
    %14 = vector.shape_cast %13 : vector<1x1x1x128xf32> to vector<1x128xf32>
    %c0_30 = arith.constant 0 : index
    %c1_31 = arith.constant 1 : index
    %c0_32 = arith.constant 0 : index
    %c0_33 = arith.constant 0 : index
    %15 = vector.load %arg3[%c0_30, %c1_31, %c0_32, %c0_33] : memref<2x2x1x128xf32, #tpu.memory_space<vmem>>, vector<1x1x1x128xf32>
    %16 = vector.shape_cast %15 : vector<1x1x1x128xf32> to vector<1x128xf32>
    %c0_34 = arith.constant 0 : index
    %c7 = arith.constant 7 : index
    %c0_35 = arith.constant 0 : index
    %17 = vector.load %arg7[%c0_34, %c7, %c0_35] : memref<2x32x128xf32, #tpu.memory_space<vmem>>, vector<2x16x8xf32>
    %c0_36 = arith.constant 0 : index
    %c0_37 = arith.constant 0 : index
    %c0_38 = arith.constant 0 : index
    %18 = vector.load %arg9[%c0_36, %c0_37, %c0_38] : memref<2x16x128xf32, #tpu.memory_space<vmem>>, vector<2x16x8xf32>
    tpu.vector_store %arg9[%c0_36, %c0_37, %c0_38], %17 {strides = array<i32>} : memref<2x16x128xf32, #tpu.memory_space<vmem>>, vector<2x16x8xf32>,
    %c0_39 = arith.constant 0 : index
    %c8_40 = arith.constant 8 : index
    %c0_41 = arith.constant 0 : index
    %19 = vector.load %arg7[%c0_39, %c8_40, %c0_41] : memref<2x32x128xf32, #tpu.memory_space<vmem>>, vector<2x16x8xf32>
    %c0_42 = arith.constant 0 : index
    %c0_43 = arith.constant 0 : index
    %c8_44 = arith.constant 8 : index
    %20 = vector.load %arg9[%c0_42, %c0_43, %c8_44] : memref<2x16x128xf32, #tpu.memory_space<vmem>>, vector<2x16x8xf32>
    tpu.vector_store %arg9[%c0_42, %c0_43, %c8_44], %19 {strides = array<i32>} : memref<2x16x128xf32, #tpu.memory_space<vmem>>, vector<2x16x8xf32>,
    %c0_45 = arith.constant 0 : index
    %c9 = arith.constant 9 : index
    %c0_46 = arith.constant 0 : index
    %21 = vector.load %arg7[%c0_45, %c9, %c0_46] : memref<2x32x128xf32, #tpu.memory_space<vmem>>, vector<2x16x8xf32>
    %c0_47 = arith.constant 0 : index
    %c0_48 = arith.constant 0 : index
    %c16 = arith.constant 16 : index
    %22 = vector.load %arg9[%c0_47, %c0_48, %c16] : memref<2x16x128xf32, #tpu.memory_space<vmem>>, vector<2x16x8xf32>
    tpu.vector_store %arg9[%c0_47, %c0_48, %c16], %21 {strides = array<i32>} : memref<2x16x128xf32, #tpu.memory_space<vmem>>, vector<2x16x8xf32>,
    %c0_49 = arith.constant 0 : index
    %c0_50 = arith.constant 0 : index
    %c0_51 = arith.constant 0 : index
    %23 = vector.load %arg9[%c0_49, %c0_50, %c0_51] : memref<2x16x128xf32, #tpu.memory_space<vmem>>, vector<2x16x128xf32>
    %24 = vector.shape_cast %23 : vector<2x16x128xf32> to vector<32x128xf32>
    %cst_52 = arith.constant dense<0.000000e+00> : vector<32x128xf32>
    %25 = tpu.matmul %24, %10, %cst_52 {dimension_numbers = #tpu.dot_dimension_numbers<[1], [0], [0], [1], [0, 0, 1, 1], [], []>} : vector<32x128xf32>, vector<128x128xf32>, vector<32x128xf32> -> vector<32x128xf32>
    %26 = vector.broadcast %14 : vector<1x128xf32> to vector<32x128xf32>
    %27 = arith.addf %25, %26 : vector<32x128xf32>
    %cst_53 = arith.constant 0.000000e+00 : f32
    %28 = vector.broadcast %cst_53 : f32 to vector<32x128xf32>
    %29 = arith.maximumf %27, %28 : vector<32x128xf32>
    %30 = vector.shape_cast %29 : vector<32x128xf32> to vector<2x16x128xf32>
    %c0_54 = arith.constant 0 : index
    %c8_55 = arith.constant 8 : index
    %c0_56 = arith.constant 0 : index
    %31 = vector.load %arg8[%c0_54, %c8_55, %c0_56] : memref<2x32x128xf32, #tpu.memory_space<vmem>>, vector<2x16x128xf32>
    tpu.vector_store %arg8[%c0_54, %c8_55, %c0_56], %30 {strides = array<i32>} : memref<2x32x128xf32, #tpu.memory_space<vmem>>, vector<2x16x128xf32>,
    %c0_57 = arith.constant 0 : index
    %c7_58 = arith.constant 7 : index
    %c0_59 = arith.constant 0 : index
    %32 = vector.load %arg8[%c0_57, %c7_58, %c0_59] : memref<2x32x128xf32, #tpu.memory_space<vmem>>, vector<2x16x16xf32>
    %c0_60 = arith.constant 0 : index
    %c0_61 = arith.constant 0 : index
    %c0_62 = arith.constant 0 : index
    %33 = vector.load %arg9[%c0_60, %c0_61, %c0_62] : memref<2x16x128xf32, #tpu.memory_space<vmem>>, vector<2x16x16xf32>
    tpu.vector_store %arg9[%c0_60, %c0_61, %c0_62], %32 {strides = array<i32>} : memref<2x16x128xf32, #tpu.memory_space<vmem>>, vector<2x16x16xf32>,
    %c0_63 = arith.constant 0 : index
    %c8_64 = arith.constant 8 : index
    %c0_65 = arith.constant 0 : index
    %34 = vector.load %arg8[%c0_63, %c8_64, %c0_65] : memref<2x32x128xf32, #tpu.memory_space<vmem>>, vector<2x16x16xf32>
    %c0_66 = arith.constant 0 : index
    %c0_67 = arith.constant 0 : index
    %c16_68 = arith.constant 16 : index
    %35 = vector.load %arg9[%c0_66, %c0_67, %c16_68] : memref<2x16x128xf32, #tpu.memory_space<vmem>>, vector<2x16x16xf32>
    tpu.vector_store %arg9[%c0_66, %c0_67, %c16_68], %34 {strides = array<i32>} : memref<2x16x128xf32, #tpu.memory_space<vmem>>, vector<2x16x16xf32>,
    %c0_69 = arith.constant 0 : index
    %c9_70 = arith.constant 9 : index
    %c0_71 = arith.constant 0 : index
    %36 = vector.load %arg8[%c0_69, %c9_70, %c0_71] : memref<2x32x128xf32, #tpu.memory_space<vmem>>, vector<2x16x16xf32>
    %c0_72 = arith.constant 0 : index
    %c0_73 = arith.constant 0 : index
    %c32 = arith.constant 32 : index
    %37 = vector.load %arg9[%c0_72, %c0_73, %c32] : memref<2x16x128xf32, #tpu.memory_space<vmem>>, vector<2x16x16xf32>
    tpu.vector_store %arg9[%c0_72, %c0_73, %c32], %36 {strides = array<i32>} : memref<2x16x128xf32, #tpu.memory_space<vmem>>, vector<2x16x16xf32>,
    %c0_74 = arith.constant 0 : index
    %c0_75 = arith.constant 0 : index
    %c0_76 = arith.constant 0 : index
    %38 = vector.load %arg9[%c0_74, %c0_75, %c0_76] : memref<2x16x128xf32, #tpu.memory_space<vmem>>, vector<2x16x128xf32>
    %39 = vector.shape_cast %38 : vector<2x16x128xf32> to vector<32x128xf32>
    %cst_77 = arith.constant dense<0.000000e+00> : vector<32x128xf32>
    %40 = tpu.matmul %39, %12, %cst_77 {dimension_numbers = #tpu.dot_dimension_numbers<[1], [0], [0], [1], [0, 0, 1, 1], [], []>} : vector<32x128xf32>, vector<128x128xf32>, vector<32x128xf32> -> vector<32x128xf32>
    %41 = vector.broadcast %16 : vector<1x128xf32> to vector<32x128xf32>
    %42 = arith.addf %40, %41 : vector<32x128xf32>
    %cst_78 = arith.constant 0.000000e+00 : f32
    %43 = vector.broadcast %cst_78 : f32 to vector<32x128xf32>
    %44 = arith.maximumf %42, %43 : vector<32x128xf32>
    %c0_79 = arith.constant 0 : index
    %c8_80 = arith.constant 8 : index
    %c0_81 = arith.constant 0 : index
    %45 = vector.load %arg7[%c0_79, %c8_80, %c0_81] : memref<2x32x128xf32, #tpu.memory_space<vmem>>, vector<2x16x128xf32>
    %46 = vector.shape_cast %45 : vector<2x16x128xf32> to vector<32x128xf32>
    %c0_82 = arith.constant 0 : index
    %c0_83 = arith.constant 0 : index
    %c0_84 = arith.constant 0 : index
    %47 = vector.load %arg4[%c0_82, %c0_83, %c0_84] : memref<3x128x128xf32, #tpu.memory_space<vmem>>, vector<1x128x128xf32>
    %48 = vector.shape_cast %47 : vector<1x128x128xf32> to vector<128x128xf32>
    %cst_85 = arith.constant dense<0.000000e+00> : vector<32x128xf32>
    %49 = tpu.matmul %46, %48, %cst_85 {dimension_numbers = #tpu.dot_dimension_numbers<[1], [0], [0], [1], [0, 0, 1, 1], [], []>} : vector<32x128xf32>, vector<128x128xf32>, vector<32x128xf32> -> vector<32x128xf32>
    %c0_86 = arith.constant 0 : index
    %c0_87 = arith.constant 0 : index
    %c0_88 = arith.constant 0 : index
    %50 = vector.load %arg5[%c0_86, %c0_87, %c0_88] : memref<3x1x128xf32, #tpu.memory_space<vmem>>, vector<1x1x128xf32>
    %51 = vector.shape_cast %50 : vector<1x1x128xf32> to vector<1x128xf32>
    %52 = vector.broadcast %51 : vector<1x128xf32> to vector<32x128xf32>
    %53 = arith.addf %49, %52 : vector<32x128xf32>
    %54 = arith.addf %44, %53 : vector<32x128xf32>
    %cst_89 = arith.constant 0.000000e+00 : f32
    %55 = vector.broadcast %cst_89 : f32 to vector<32x128xf32>
    %56 = arith.maximumf %54, %55 : vector<32x128xf32>
    %57 = vector.shape_cast %56 : vector<32x128xf32> to vector<2x16x128xf32>
    %c0_90 = arith.constant 0 : index
    %c8_91 = arith.constant 8 : index
    %c0_92 = arith.constant 0 : index
    %58 = vector.load %arg7[%c0_90, %c8_91, %c0_92] : memref<2x32x128xf32, #tpu.memory_space<vmem>>, vector<2x16x128xf32>
    tpu.vector_store %arg7[%c0_90, %c8_91, %c0_92], %57 {strides = array<i32>} : memref<2x32x128xf32, #tpu.memory_space<vmem>>, vector<2x16x128xf32>,
    %c1_93 = arith.constant 1 : index
    %c0_94 = arith.constant 0 : index
    %c0_95 = arith.constant 0 : index
    %c0_96 = arith.constant 0 : index
    %59 = vector.load %arg2[%c1_93, %c0_94, %c0_95, %c0_96] : memref<2x2x128x128xf32, #tpu.memory_space<vmem>>, vector<1x1x128x128xf32>
    %60 = vector.shape_cast %59 : vector<1x1x128x128xf32> to vector<128x128xf32>
    %c1_97 = arith.constant 1 : index
    %c1_98 = arith.constant 1 : index
    %c0_99 = arith.constant 0 : index
    %c0_100 = arith.constant 0 : index
    %61 = vector.load %arg2[%c1_97, %c1_98, %c0_99, %c0_100] : memref<2x2x128x128xf32, #tpu.memory_space<vmem>>, vector<1x1x128x128xf32>
    %62 = vector.shape_cast %61 : vector<1x1x128x128xf32> to vector<128x128xf32>
    %c1_101 = arith.constant 1 : index
    %c0_102 = arith.constant 0 : index
    %c0_103 = arith.constant 0 : index
    %c0_104 = arith.constant 0 : index
    %63 = vector.load %arg3[%c1_101, %c0_102, %c0_103, %c0_104] : memref<2x2x1x128xf32, #tpu.memory_space<vmem>>, vector<1x1x1x128xf32>
    %64 = vector.shape_cast %63 : vector<1x1x1x128xf32> to vector<1x128xf32>
    %c1_105 = arith.constant 1 : index
    %c1_106 = arith.constant 1 : index
    %c0_107 = arith.constant 0 : index
    %c0_108 = arith.constant 0 : index
    %65 = vector.load %arg3[%c1_105, %c1_106, %c0_107, %c0_108] : memref<2x2x1x128xf32, #tpu.memory_space<vmem>>, vector<1x1x1x128xf32>
    %66 = vector.shape_cast %65 : vector<1x1x1x128xf32> to vector<1x128xf32>
    %c0_109 = arith.constant 0 : index
    %c6 = arith.constant 6 : index
    %c0_110 = arith.constant 0 : index
    %67 = vector.load %arg7[%c0_109, %c6, %c0_110] : memref<2x32x128xf32, #tpu.memory_space<vmem>>, vector<2x16x16xf32>
    %c0_111 = arith.constant 0 : index
    %c0_112 = arith.constant 0 : index
    %c0_113 = arith.constant 0 : index
    %68 = vector.load %arg9[%c0_111, %c0_112, %c0_113] : memref<2x16x128xf32, #tpu.memory_space<vmem>>, vector<2x16x16xf32>
    tpu.vector_store %arg9[%c0_111, %c0_112, %c0_113], %67 {strides = array<i32>} : memref<2x16x128xf32, #tpu.memory_space<vmem>>, vector<2x16x16xf32>,
    %c0_114 = arith.constant 0 : index
    %c8_115 = arith.constant 8 : index
    %c0_116 = arith.constant 0 : index
    %69 = vector.load %arg7[%c0_114, %c8_115, %c0_116] : memref<2x32x128xf32, #tpu.memory_space<vmem>>, vector<2x16x16xf32>
    %c0_117 = arith.constant 0 : index
    %c0_118 = arith.constant 0 : index
    %c16_119 = arith.constant 16 : index
    %70 = vector.load %arg9[%c0_117, %c0_118, %c16_119] : memref<2x16x128xf32, #tpu.memory_space<vmem>>, vector<2x16x16xf32>
    tpu.vector_store %arg9[%c0_117, %c0_118, %c16_119], %69 {strides = array<i32>} : memref<2x16x128xf32, #tpu.memory_space<vmem>>, vector<2x16x16xf32>,
    %c0_120 = arith.constant 0 : index
    %c10 = arith.constant 10 : index
    %c0_121 = arith.constant 0 : index
    %71 = vector.load %arg7[%c0_120, %c10, %c0_121] : memref<2x32x128xf32, #tpu.memory_space<vmem>>, vector<2x16x16xf32>
    %c0_122 = arith.constant 0 : index
    %c0_123 = arith.constant 0 : index
    %c32_124 = arith.constant 32 : index
    %72 = vector.load %arg9[%c0_122, %c0_123, %c32_124] : memref<2x16x128xf32, #tpu.memory_space<vmem>>, vector<2x16x16xf32>
    tpu.vector_store %arg9[%c0_122, %c0_123, %c32_124], %71 {strides = array<i32>} : memref<2x16x128xf32, #tpu.memory_space<vmem>>, vector<2x16x16xf32>,
    %c0_125 = arith.constant 0 : index
    %c0_126 = arith.constant 0 : index
    %c0_127 = arith.constant 0 : index
    %73 = vector.load %arg9[%c0_125, %c0_126, %c0_127] : memref<2x16x128xf32, #tpu.memory_space<vmem>>, vector<2x16x128xf32>
    %74 = vector.shape_cast %73 : vector<2x16x128xf32> to vector<32x128xf32>
    %cst_128 = arith.constant dense<0.000000e+00> : vector<32x128xf32>
    %75 = tpu.matmul %74, %60, %cst_128 {dimension_numbers = #tpu.dot_dimension_numbers<[1], [0], [0], [1], [0, 0, 1, 1], [], []>} : vector<32x128xf32>, vector<128x128xf32>, vector<32x128xf32> -> vector<32x128xf32>
    %76 = vector.broadcast %64 : vector<1x128xf32> to vector<32x128xf32>
    %77 = arith.addf %75, %76 : vector<32x128xf32>
    %cst_129 = arith.constant 0.000000e+00 : f32
    %78 = vector.broadcast %cst_129 : f32 to vector<32x128xf32>
    %79 = arith.maximumf %77, %78 : vector<32x128xf32>
    %80 = vector.shape_cast %79 : vector<32x128xf32> to vector<2x16x128xf32>
    %c0_130 = arith.constant 0 : index
    %c8_131 = arith.constant 8 : index
    %c0_132 = arith.constant 0 : index
    %81 = vector.load %arg8[%c0_130, %c8_131, %c0_132] : memref<2x32x128xf32, #tpu.memory_space<vmem>>, vector<2x16x128xf32>
    tpu.vector_store %arg8[%c0_130, %c8_131, %c0_132], %80 {strides = array<i32>} : memref<2x32x128xf32, #tpu.memory_space<vmem>>, vector<2x16x128xf32>,
    %c0_133 = arith.constant 0 : index
    %c6_134 = arith.constant 6 : index
    %c0_135 = arith.constant 0 : index
    %82 = vector.load %arg8[%c0_133, %c6_134, %c0_135] : memref<2x32x128xf32, #tpu.memory_space<vmem>>, vector<2x16x16xf32>
    %c0_136 = arith.constant 0 : index
    %c0_137 = arith.constant 0 : index
    %c0_138 = arith.constant 0 : index
    %83 = vector.load %arg9[%c0_136, %c0_137, %c0_138] : memref<2x16x128xf32, #tpu.memory_space<vmem>>, vector<2x16x16xf32>
    tpu.vector_store %arg9[%c0_136, %c0_137, %c0_138], %82 {strides = array<i32>} : memref<2x16x128xf32, #tpu.memory_space<vmem>>, vector<2x16x16xf32>,
    %c0_139 = arith.constant 0 : index
    %c8_140 = arith.constant 8 : index
    %c0_141 = arith.constant 0 : index
    %84 = vector.load %arg8[%c0_139, %c8_140, %c0_141] : memref<2x32x128xf32, #tpu.memory_space<vmem>>, vector<2x16x16xf32>
    %c0_142 = arith.constant 0 : index
    %c0_143 = arith.constant 0 : index
    %c16_144 = arith.constant 16 : index
    %85 = vector.load %arg9[%c0_142, %c0_143, %c16_144] : memref<2x16x128xf32, #tpu.memory_space<vmem>>, vector<2x16x16xf32>
    tpu.vector_store %arg9[%c0_142, %c0_143, %c16_144], %84 {strides = array<i32>} : memref<2x16x128xf32, #tpu.memory_space<vmem>>, vector<2x16x16xf32>,
    %c0_145 = arith.constant 0 : index
    %c10_146 = arith.constant 10 : index
    %c0_147 = arith.constant 0 : index
    %86 = vector.load %arg8[%c0_145, %c10_146, %c0_147] : memref<2x32x128xf32, #tpu.memory_space<vmem>>, vector<2x16x16xf32>
    %c0_148 = arith.constant 0 : index
    %c0_149 = arith.constant 0 : index
    %c32_150 = arith.constant 32 : index
    %87 = vector.load %arg9[%c0_148, %c0_149, %c32_150] : memref<2x16x128xf32, #tpu.memory_space<vmem>>, vector<2x16x16xf32>
    tpu.vector_store %arg9[%c0_148, %c0_149, %c32_150], %86 {strides = array<i32>} : memref<2x16x128xf32, #tpu.memory_space<vmem>>, vector<2x16x16xf32>,
    %c0_151 = arith.constant 0 : index
    %c0_152 = arith.constant 0 : index
    %c0_153 = arith.constant 0 : index
    %88 = vector.load %arg9[%c0_151, %c0_152, %c0_153] : memref<2x16x128xf32, #tpu.memory_space<vmem>>, vector<2x16x128xf32>
    %89 = vector.shape_cast %88 : vector<2x16x128xf32> to vector<32x128xf32>
    %cst_154 = arith.constant dense<0.000000e+00> : vector<32x128xf32>
    %90 = tpu.matmul %89, %62, %cst_154 {dimension_numbers = #tpu.dot_dimension_numbers<[1], [0], [0], [1], [0, 0, 1, 1], [], []>} : vector<32x128xf32>, vector<128x128xf32>, vector<32x128xf32> -> vector<32x128xf32>
    %91 = vector.broadcast %66 : vector<1x128xf32> to vector<32x128xf32>
    %92 = arith.addf %90, %91 : vector<32x128xf32>
    %cst_155 = arith.constant 0.000000e+00 : f32
    %93 = vector.broadcast %cst_155 : f32 to vector<32x128xf32>
    %94 = arith.maximumf %92, %93 : vector<32x128xf32>
    %c0_156 = arith.constant 0 : index
    %c8_157 = arith.constant 8 : index
    %c0_158 = arith.constant 0 : index
    %95 = vector.load %arg7[%c0_156, %c8_157, %c0_158] : memref<2x32x128xf32, #tpu.memory_space<vmem>>, vector<2x16x128xf32>
    %96 = vector.shape_cast %95 : vector<2x16x128xf32> to vector<32x128xf32>
    %97 = arith.addf %94, %96 : vector<32x128xf32>
    %cst_159 = arith.constant 0.000000e+00 : f32
    %98 = vector.broadcast %cst_159 : f32 to vector<32x128xf32>
    %99 = arith.maximumf %97, %98 : vector<32x128xf32>
    %100 = vector.shape_cast %99 : vector<32x128xf32> to vector<2x16x128xf32>
    %c0_160 = arith.constant 0 : index
    %c8_161 = arith.constant 8 : index
    %c0_162 = arith.constant 0 : index
    %101 = vector.load %arg7[%c0_160, %c8_161, %c0_162] : memref<2x32x128xf32, #tpu.memory_space<vmem>>, vector<2x16x128xf32>
    tpu.vector_store %arg7[%c0_160, %c8_161, %c0_162], %100 {strides = array<i32>} : memref<2x32x128xf32, #tpu.memory_space<vmem>>, vector<2x16x128xf32>,
    %c0_163 = arith.constant 0 : index
    %c8_164 = arith.constant 8 : index
    %c0_165 = arith.constant 0 : index
    %102 = vector.load %arg7[%c0_163, %c8_164, %c0_165] : memref<2x32x128xf32, #tpu.memory_space<vmem>>, vector<2x16x128xf32>
    %103 = vector.shape_cast %102 : vector<2x16x128xf32> to vector<32x128xf32>
    %c2 = arith.constant 2 : index
    %c0_166 = arith.constant 0 : index
    %c0_167 = arith.constant 0 : index
    %104 = vector.load %arg4[%c2, %c0_166, %c0_167] : memref<3x128x128xf32, #tpu.memory_space<vmem>>, vector<1x128x128xf32>
    %105 = vector.shape_cast %104 : vector<1x128x128xf32> to vector<128x128xf32>
    %cst_168 = arith.constant dense<0.000000e+00> : vector<32x128xf32>
    %106 = tpu.matmul %103, %105, %cst_168 {dimension_numbers = #tpu.dot_dimension_numbers<[1], [0], [0], [1], [0, 0, 1, 1], [], []>} : vector<32x128xf32>, vector<128x128xf32>, vector<32x128xf32> -> vector<32x128xf32>
    %c2_169 = arith.constant 2 : index
    %c0_170 = arith.constant 0 : index
    %c0_171 = arith.constant 0 : index
    %107 = vector.load %arg5[%c2_169, %c0_170, %c0_171] : memref<3x1x128xf32, #tpu.memory_space<vmem>>, vector<1x1x128xf32>
    %108 = vector.shape_cast %107 : vector<1x1x128xf32> to vector<1x128xf32>
    %109 = vector.broadcast %108 : vector<1x128xf32> to vector<32x128xf32>
    %110 = arith.addf %106, %109 : vector<32x128xf32>
    %111 = vector.shape_cast %110 : vector<32x128xf32> to vector<2x16x128xf32>
    %c0_172 = arith.constant 0 : index
    %c0_173 = arith.constant 0 : index
    %c0_174 = arith.constant 0 : index
    %112 = vector.load %arg6[%c0_172, %c0_173, %c0_174] : memref<2x16x128xf32, #tpu.memory_space<vmem>>, vector<2x16x128xf32>
    tpu.vector_store %arg6[%c0_172, %c0_173, %c0_174], %111 {strides = array<i32>} : memref<2x16x128xf32, #tpu.memory_space<vmem>>, vector<2x16x128xf32>,
    return
  }
  func.func @transform_0(%arg0: i32) -> (i32, i32, i32) {
    %c0_i32 = arith.constant 0 : i32
    %c0_i32_0 = arith.constant 0 : i32
    %c0_i32_1 = arith.constant 0 : i32
    return %arg0, %c0_i32, %c0_i32_0 : i32, i32, i32
  }
  func.func @transform_1(%arg0: i32) -> (i32, i32, i32, i32) {
    %c0_i32 = arith.constant 0 : i32
    %c0_i32_0 = arith.constant 0 : i32
    %c0_i32_1 = arith.constant 0 : i32
    %c0_i32_2 = arith.constant 0 : i32
    %c0_i32_3 = arith.constant 0 : i32
    return %c0_i32, %c0_i32_0, %c0_i32_1, %c0_i32_2 : i32, i32, i32, i32
  }
  func.func @transform_2(%arg0: i32) -> (i32, i32, i32, i32) {
    %c0_i32 = arith.constant 0 : i32
    %c0_i32_0 = arith.constant 0 : i32
    %c0_i32_1 = arith.constant 0 : i32
    %c0_i32_2 = arith.constant 0 : i32
    %c0_i32_3 = arith.constant 0 : i32
    return %c0_i32, %c0_i32_0, %c0_i32_1, %c0_i32_2 : i32, i32, i32, i32
  }
  func.func @transform_3(%arg0: i32) -> (i32, i32, i32) {
    %c0_i32 = arith.constant 0 : i32
    %c0_i32_0 = arith.constant 0 : i32
    %c0_i32_1 = arith.constant 0 : i32
    %c0_i32_2 = arith.constant 0 : i32
    return %c0_i32, %c0_i32_0, %c0_i32_1 : i32, i32, i32
  }
  func.func @transform_4(%arg0: i32) -> (i32, i32, i32) {
    %c0_i32 = arith.constant 0 : i32
    %c0_i32_0 = arith.constant 0 : i32
    %c0_i32_1 = arith.constant 0 : i32
    %c0_i32_2 = arith.constant 0 : i32
    return %c0_i32, %c0_i32_0, %c0_i32_1 : i32, i32, i32
  }
  func.func @transform_5(%arg0: i32) -> (i32, i32, i32) {
    %c0_i32 = arith.constant 0 : i32
    %c0_i32_0 = arith.constant 0 : i32
    %c0_i32_1 = arith.constant 0 : i32
    return %arg0, %c0_i32, %c0_i32_0 : i32, i32, i32
  }
}

</mosaic_0001>

<llo_original>
// kernel: tpu_custom_call.1
$region0: #{tpu_custom_call.1}
  #allocation0 [shape = 'u32[]', space=smem, size = 0x4, offset = 0x4, fixed_abs, tag = 'smem constant byte address 0x4 - core index']
  #allocation1 [shape = 'u32[72,128]{1,0:T(1,128)}', space=vmem, size = 0x9000, scoped, tag = 'internal scratch']
  #allocation2 [shape = 'f32[2,32,128]{2,1,0:T(8,128)}', space=vmem, size = 0x8000, scoped, tag = 'scratch operand']
  #allocation3 [shape = 'f32[2,32,128]{2,1,0:T(8,128)}', space=vmem, size = 0x8000, scoped, tag = 'scratch operand']
  #allocation4 [shape = 'f32[2,16,128]{2,1,0:T(8,128)}', space=vmem, size = 0x4000, scoped, tag = 'scratch operand']
  %s0 = inlined_call_operand.hbm [shape: f32[2,16,128], index: 0, kind: input, shape index: {}]
  %s1 = inlined_call_operand.hbm [shape: f32[2,2,128,128], index: 1, kind: input, shape index: {}]
  %s2 = inlined_call_operand.hbm [shape: f32[2,2,1,128], index: 2, kind: input, shape index: {}]
  %s3 = inlined_call_operand.hbm [shape: f32[3,128,128], index: 3, kind: input, shape index: {}]
  %s4 = inlined_call_operand.vmem [shape: f32[3,1,128], index: 4, kind: input, shape index: {}]
  %s5 = inlined_call_operand.hbm [shape: f32[2,16,128], index: 5, kind: output, shape index: {}]
  %s6 = sld [smem:[#allocation0]]
  $region46: #{tpu_custom_call.1} parent=0
    _
  %s8 = ssub.s32 1, %s6
  %s9 = scalar_select 0, %s8, %s6
  $region1: #{tpu_custom_call.1} parent=0
    #allocation5 [shape = 'u8[16384]{0}', space=vmem, size = 0x4000, scoped, tag = 'input window, operand 0, single buffered']
    #allocation6 [shape = 's32[1]{0}', space=sflag, size = 0x4, scoped, tag = 'scoped memory for tpu_custom_call.1']
    #allocation7 [shape = 's32[1]{0}', space=sflag, size = 0x4, scoped, tag = 'scoped memory for tpu_custom_call.1']
    #allocation8 [shape = 'u8[262144]{0}', space=vmem, size = 0x40000, scoped, tag = 'input window, operand 1, single buffered']
    #allocation9 [shape = 's32[1]{0}', space=sflag, size = 0x4, scoped, tag = 'scoped memory for tpu_custom_call.1']
    #allocation10 [shape = 'u8[2048]{0}', space=vmem, size = 0x800, scoped, tag = 'input window, operand 2, single buffered']
    #allocation11 [shape = 'u8[196608]{0}', space=vmem, size = 0x30000, scoped, tag = 'input window, operand 3, single buffered']
    #allocation12 [shape = 's32[1]{0}', space=sflag, size = 0x4, scoped, tag = 'scoped memory for tpu_custom_call.1']
    #allocation13 [shape = 'u8[16384]{0}', space=vmem, size = 0x4000, scoped, tag = 'output window, operand 0, single buffered']
    %10 = vsyncpa [#allocation6], 0
    %11 = vsyncpa [#allocation9], 0
    %12 = vsyncpa [#allocation12], 0
    %13 = vsyncpa [#allocation7], 0
    // Predicated region
    $region2: #{tpu_custom_call.1} parent=1 // pred_check
      _
    $region3: #{tpu_custom_call.1} parent=1 // pred_check_branch
      %15 = sbr.rel (0) target = $region5
    $region4: #{tpu_custom_call.1} parent=1 // pred_region
      %17 = vsyncadd [#allocation6], 0
      %s18 = sshll.u32 %s0, 4
      %s19 = int_to_ptr.hbm [resolvable:$true] %s18
      %s20 = sshll.u32 [#allocation5], 4
      %s21 = int_to_ptr.vmem [resolvable:$true] %s20
      %26 = dma.hbm_to_vmem [thread:$0]  %s19, 512, %s21, [#allocation6], 128, 128, 8
    $region5: #{tpu_custom_call.1} parent=1 // pred_fallthru
      _
    // Predicated region
    $region6: #{tpu_custom_call.1} parent=1 // pred_check
      _
    $region7: #{tpu_custom_call.1} parent=1 // pred_check_branch
      %28 = sbr.rel (0) target = $region9
    $region8: #{tpu_custom_call.1} parent=1 // pred_region
      %30 = vsyncadd [#allocation9], 0
      %s31 = sshll.u32 %s1, 4
      %s32 = int_to_ptr.hbm [resolvable:$true] %s31
      %s33 = sshll.u32 [#allocation8], 4
      %s34 = int_to_ptr.vmem [resolvable:$true] %s33
      %39 = dma.hbm_to_vmem [thread:$0]  %s32, 8192, %s34, [#allocation9], 128, 128, 8
    $region9: #{tpu_custom_call.1} parent=1 // pred_fallthru
      _
    // Predicated region
    $region10: #{tpu_custom_call.1} parent=1 // pred_check
      _
    $region11: #{tpu_custom_call.1} parent=1 // pred_check_branch
      %41 = sbr.rel (0) target = $region13
    $region12: #{tpu_custom_call.1} parent=1 // pred_region
      %43 = vsyncadd [#allocation9], 0
      %s44 = sshll.u32 %s2, 4
      %s45 = int_to_ptr.hbm [resolvable:$true] %s44
      %s46 = sshll.u32 [#allocation10], 4
      %s47 = int_to_ptr.vmem [resolvable:$true] %s46
      %52 = dma.hbm_to_vmem [thread:$0]  %s45, 64, %s47, [#allocation9], 16, 16, 1
    $region13: #{tpu_custom_call.1} parent=1 // pred_fallthru
      _
    // Predicated region
    $region14: #{tpu_custom_call.1} parent=1 // pred_check
      _
    $region15: #{tpu_custom_call.1} parent=1 // pred_check_branch
      %54 = sbr.rel (0) target = $region17
    $region16: #{tpu_custom_call.1} parent=1 // pred_region
      %56 = vsyncadd [#allocation12], 0
      %s57 = sshll.u32 %s3, 4
      %s58 = int_to_ptr.hbm [resolvable:$true] %s57
      %s59 = sshll.u32 [#allocation11], 4
      %s60 = int_to_ptr.vmem [resolvable:$true] %s59
      %65 = dma.hbm_to_vmem [thread:$0]  %s58, 6144, %s60, [#allocation12], 128, 128, 8
    $region17: #{tpu_custom_call.1} parent=1 // pred_fallthru
      _
    // Predicated region
    $region18: #{tpu_custom_call.1} parent=1 // pred_check
      _
    $region19: #{tpu_custom_call.1} parent=1 // pred_check_branch
      %67 = sbr.rel (0) target = $region21
    $region20: #{tpu_custom_call.1} parent=1 // pred_region
      _
    $region21: #{tpu_custom_call.1} parent=1 // pred_fallthru
      _
    // Predicated region
    $region22: #{tpu_custom_call.1} parent=1 // pred_check
      _
    $region23: #{tpu_custom_call.1} parent=1 // pred_check_branch
      %69 = sbr.rel (0) target = $region25
    $region24: #{tpu_custom_call.1} parent=1 // pred_region
      %71 = dma.done [#allocation6], 512
    $region25: #{tpu_custom_call.1} parent=1 // pred_fallthru
      _
    // Predicated region
    $region26: #{tpu_custom_call.1} parent=1 // pred_check
      _
    $region27: #{tpu_custom_call.1} parent=1 // pred_check_branch
      %73 = sbr.rel (0) target = $region29
    $region28: #{tpu_custom_call.1} parent=1 // pred_region
      %75 = dma.done [#allocation9], 8192
    $region29: #{tpu_custom_call.1} parent=1 // pred_fallthru
      _
    // Predicated region
    $region30: #{tpu_custom_call.1} parent=1 // pred_check
      _
    $region31: #{tpu_custom_call.1} parent=1 // pred_check_branch
      %77 = sbr.rel (0) target = $region33
    $region32: #{tpu_custom_call.1} parent=1 // pred_region
      %79 = dma.done [#allocation9], 64
    $region33: #{tpu_custom_call.1} parent=1 // pred_fallthru
      _
    // Predicated region
    $region34: #{tpu_custom_call.1} parent=1 // pred_check
      _
    $region35: #{tpu_custom_call.1} parent=1 // pred_check_branch
      %81 = sbr.rel (0) target = $region37
    $region36: #{tpu_custom_call.1} parent=1 // pred_region
      %83 = dma.done [#allocation12], 6144
    $region37: #{tpu_custom_call.1} parent=1 // pred_fallthru
      _
    %84 = vst [vmem:[#allocation2] sm:$0xff] 0.0
    %85 = vst [vmem:[#allocation2 + $0x20] sm:$0xff] 0.0
    %86 = vst [vmem:[#allocation2 + $0x18] sm:$0xff] 0.0
    %87 = vst [vmem:[#allocation2 + $0x38] sm:$0xff] 0.0
    %88 = vst [vmem:[#allocation3] sm:$0xff] 0.0
    %89 = vst [vmem:[#allocation3 + $0x20] sm:$0xff] 0.0
    %90 = vst [vmem:[#allocation3 + $0x18] sm:$0xff] 0.0
    %91 = vst [vmem:[#allocation3 + $0x38] sm:$0xff] 0.0
    %92 = vst [vmem:[#allocation4] sm:$0xff] 0.0
    %93 = vst [vmem:[#allocation4 + $0x8] sm:$0xff] 0.0
    %94 = vst [vmem:[#allocation4 + $0x10] sm:$0xff] 0.0
    %95 = vst [vmem:[#allocation4 + $0x18] sm:$0xff] 0.0
    %v96 = vld [vmem:[#allocation5] sm:$0xff]
    %v97 = vld [vmem:[#allocation5 + $0x8] sm:$0xff]
    %v98 = vld [vmem:[#allocation5 + $0x10] sm:$0xff]
    %v99 = vld [vmem:[#allocation5 + $0x18] sm:$0xff]
    %100 = vst [vmem:[#allocation2 + $0x8] sm:$0xff] %v96
    %101 = vst [vmem:[#allocation2 + $0x10] sm:$0xff] %v97
    %102 = vst [vmem:[#allocation2 + $0x28] sm:$0xff] %v98
    %103 = vst [vmem:[#allocation2 + $0x30] sm:$0xff] %v99
    %v104 = vld [vmem:[#allocation8] sm:$0xff]
    %v105 = vld [vmem:[#allocation8 + $0x8] sm:$0xff]
    %v106 = vld [vmem:[#allocation8 + $0x10] sm:$0xff]
    %v107 = vld [vmem:[#allocation8 + $0x18] sm:$0xff]
    %v108 = vld [vmem:[#allocation8 + $0x20] sm:$0xff]
    %v109 = vld [vmem:[#allocation8 + $0x28] sm:$0xff]
    %v110 = vld [vmem:[#allocation8 + $0x30] sm:$0xff]
    %v111 = vld [vmem:[#allocation8 + $0x38] sm:$0xff]
    %v112 = vld [vmem:[#allocation8 + $0x40] sm:$0xff]
    %v113 = vld [vmem:[#allocation8 + $0x48] sm:$0xff]
    %v114 = vld [vmem:[#allocation8 + $0x50] sm:$0xff]
    %v115 = vld [vmem:[#allocation8 + $0x58] sm:$0xff]
    %v116 = vld [vmem:[#allocation8 + $0x60] sm:$0xff]
    %v117 = vld [vmem:[#allocation8 + $0x68] sm:$0xff]
    %v118 = vld [vmem:[#allocation8 + $0x70] sm:$0xff]
    %v119 = vld [vmem:[#allocation8 + $0x78] sm:$0xff]
    %s120 = scalar_lea.vmem [#allocation8], 128
    %v121 = vld [vmem:[%s120] sm:$0xff]
    %v122 = vld [vmem:[%s120 + $0x8] sm:$0xff]
    %v123 = vld [vmem:[%s120 + $0x10] sm:$0xff]
    %v124 = vld [vmem:[%s120 + $0x18] sm:$0xff]
    %v125 = vld [vmem:[%s120 + $0x20] sm:$0xff]
    %v126 = vld [vmem:[%s120 + $0x28] sm:$0xff]
    %v127 = vld [vmem:[%s120 + $0x30] sm:$0xff]
    %v128 = vld [vmem:[%s120 + $0x38] sm:$0xff]
    %v129 = vld [vmem:[%s120 + $0x40] sm:$0xff]
    %v130 = vld [vmem:[%s120 + $0x48] sm:$0xff]
    %v131 = vld [vmem:[%s120 + $0x50] sm:$0xff]
    %v132 = vld [vmem:[%s120 + $0x58] sm:$0xff]
    %v133 = vld [vmem:[%s120 + $0x60] sm:$0xff]
    %v134 = vld [vmem:[%s120 + $0x68] sm:$0xff]
    %v135 = vld [vmem:[%s120 + $0x70] sm:$0xff]
    %v136 = vld [vmem:[%s120 + $0x78] sm:$0xff]
    %v137 = vld [vmem:[#allocation10] sm:$0x1]
    %s138 = scalar_lea.vmem [#allocation10], 1
    %v139 = vld [vmem:[%s138] sm:$0x1]
    %v140 = vld [vmem:[#allocation2 + $0x7] sm:$0xff]
    %v141 = vld [vmem:[#allocation2 + $0xf] sm:$0xff]
    %v142 = vld [vmem:[#allocation2 + $0x27] sm:$0xff]
    %v143 = vld [vmem:[#allocation2 + $0x2f] sm:$0xff]
    %vm144 = vcmask 64512
    %145 = vst.msk [vmem:[#allocation4] sm:$0xff] %vm144, %v140
    %146 = vst.msk [vmem:[#allocation4 + $0x8] sm:$0xff] %vm144, %v141
    %147 = vst.msk [vmem:[#allocation4 + $0x10] sm:$0xff] %vm144, %v142
    %148 = vst.msk [vmem:[#allocation4 + $0x18] sm:$0xff] %vm144, %v143
    %v149 = vld [vmem:[#allocation2 + $0x8] sm:$0xff]
    %v150 = vld [vmem:[#allocation2 + $0x10] sm:$0xff]
    %v151 = vld [vmem:[#allocation2 + $0x28] sm:$0xff]
    %v152 = vld [vmem:[#allocation2 + $0x30] sm:$0xff]
    %157 = vrot.lane.b32.xlu0 %v149, 8
    %v158 = vpop.permute.xlu0 %157
    %159 = vrot.lane.b32.xlu0 %v150, 8
    %v160 = vpop.permute.xlu0 %159
    %161 = vrot.lane.b32.xlu0 %v151, 8
    %v162 = vpop.permute.xlu0 %161
    %163 = vrot.lane.b32.xlu0 %v152, 8
    %v164 = vpop.permute.xlu0 %163
    %vm169 = vcmask 130112
    %170 = vst.msk [vmem:[#allocation4] sm:$0xff] %vm169, %v158
    %171 = vst.msk [vmem:[#allocation4 + $0x8] sm:$0xff] %vm169, %v160
    %172 = vst.msk [vmem:[#allocation4 + $0x10] sm:$0xff] %vm169, %v162
    %173 = vst.msk [vmem:[#allocation4 + $0x18] sm:$0xff] %vm169, %v164
    %v174 = vld [vmem:[#allocation2 + $0x9] sm:$0xff]
    %v175 = vld [vmem:[#allocation2 + $0x11] sm:$0xff]
    %v176 = vld [vmem:[#allocation2 + $0x29] sm:$0xff]
    %v177 = vld [vmem:[#allocation2 + $0x31] sm:$0xff]
    %182 = vrot.lane.b32.xlu0 %v174, 16
    %v183 = vpop.permute.xlu0 %182
    %184 = vrot.lane.b32.xlu0 %v175, 16
    %v185 = vpop.permute.xlu0 %184
    %186 = vrot.lane.b32.xlu0 %v176, 16
    %v187 = vpop.permute.xlu0 %186
    %188 = vrot.lane.b32.xlu0 %v177, 16
    %v189 = vpop.permute.xlu0 %188
    %vm194 = vcmask 195712
    %195 = vst.msk [vmem:[#allocation4] sm:$0xff] %vm194, %v183
    %196 = vst.msk [vmem:[#allocation4 + $0x8] sm:$0xff] %vm194, %v185
    %197 = vst.msk [vmem:[#allocation4 + $0x10] sm:$0xff] %vm194, %v187
    %198 = vst.msk [vmem:[#allocation4 + $0x18] sm:$0xff] %vm194, %v189
    %v199 = vld [vmem:[#allocation4] sm:$0xff]
    %v200 = vld [vmem:[#allocation4 + $0x8] sm:$0xff]
    %v201 = vld [vmem:[#allocation4 + $0x10] sm:$0xff]
    %v202 = vld [vmem:[#allocation4 + $0x18] sm:$0xff]
    %v204 = vperm.slane %v137, 0
    %206 = vmatpush.msra.mxu0 %v119
    %207 = vmatpush.msra.mxu0 %v118
    %208 = vmatpush.msra.mxu0 %v117
    %209 = vmatpush.msra.mxu0 %v116
    %210 = vmatpush.msra.mxu0 %v115
    %211 = vmatpush.msra.mxu0 %v114
    %212 = vmatpush.msra.mxu0 %v113
    %213 = vmatpush.msra.mxu0 %v112
    %214 = vmatpush.msra.mxu0 %v111
    %215 = vmatpush.msra.mxu0 %v110
    %216 = vmatpush.msra.mxu0 %v109
    %217 = vmatpush.msra.mxu0 %v108
    %218 = vmatpush.msra.mxu0 %v107
    %219 = vmatpush.msra.mxu0 %v106
    %220 = vmatpush.msra.mxu0 %v105
    %221 = vmatpush.msra.mxu0 %v104
    %222 = vmatmul.f32.gmra.mxu0 %v199
    %v223 = vpop.f32.mrf.mxu0
    %v224 = vadd.f32 %v204, %v223
    %225 = vmatmul.f32.gmra.mxu0 %v200
    %v226 = vpop.f32.mrf.mxu0
    %v227 = vadd.f32 %v204, %v226
    %228 = vmatmul.f32.gmra.mxu0 %v201
    %v229 = vpop.f32.mrf.mxu0
    %v230 = vadd.f32 %v204, %v229
    %231 = vmatmul.f32.gmra.mxu0 %v202
    %v232 = vpop.f32.mrf.mxu0
    %v233 = vadd.f32 %v204, %v232
    %234 = vdwg.mxu0
    %v235 = vmax.f32 %v224, 0.0
    %v236 = vmax.f32 %v227, 0.0
    %v237 = vmax.f32 %v230, 0.0
    %v238 = vmax.f32 %v233, 0.0
    %239 = vst [vmem:[#allocation3 + $0x8] sm:$0xff] %v235
    %240 = vst [vmem:[#allocation3 + $0x10] sm:$0xff] %v236
    %241 = vst [vmem:[#allocation3 + $0x28] sm:$0xff] %v237
    %242 = vst [vmem:[#allocation3 + $0x30] sm:$0xff] %v238
    %v243 = vld [vmem:[#allocation3 + $0x7] sm:$0xff]
    %v244 = vld [vmem:[#allocation3 + $0xf] sm:$0xff]
    %v245 = vld [vmem:[#allocation3 + $0x27] sm:$0xff]
    %v246 = vld [vmem:[#allocation3 + $0x2f] sm:$0xff]
    %vm247 = vcmask 130048
    %248 = vst.msk [vmem:[#allocation4] sm:$0xff] %vm247, %v243
    %249 = vst.msk [vmem:[#allocation4 + $0x8] sm:$0xff] %vm247, %v244
    %250 = vst.msk [vmem:[#allocation4 + $0x10] sm:$0xff] %vm247, %v245
    %251 = vst.msk [vmem:[#allocation4 + $0x18] sm:$0xff] %vm247, %v246
    %v252 = vld [vmem:[#allocation3 + $0x8] sm:$0xff]
    %v253 = vld [vmem:[#allocation3 + $0x10] sm:$0xff]
    %v254 = vld [vmem:[#allocation3 + $0x28] sm:$0xff]
    %v255 = vld [vmem:[#allocation3 + $0x30] sm:$0xff]
    %260 = vrot.lane.b32.xlu0 %v252, 16
    %v261 = vpop.permute.xlu0 %260
    %262 = vrot.lane.b32.xlu0 %v253, 16
    %v263 = vpop.permute.xlu0 %262
    %264 = vrot.lane.b32.xlu0 %v254, 16
    %v265 = vpop.permute.xlu0 %264
    %266 = vrot.lane.b32.xlu0 %v255, 16
    %v267 = vpop.permute.xlu0 %266
    %vm272 = vcmask 261248
    %273 = vst.msk [vmem:[#allocation4] sm:$0xff] %vm272, %v261
    %274 = vst.msk [vmem:[#allocation4 + $0x8] sm:$0xff] %vm272, %v263
    %275 = vst.msk [vmem:[#allocation4 + $0x10] sm:$0xff] %vm272, %v265
    %276 = vst.msk [vmem:[#allocation4 + $0x18] sm:$0xff] %vm272, %v267
    %v277 = vld [vmem:[#allocation3 + $0x9] sm:$0xff]
    %v278 = vld [vmem:[#allocation3 + $0x11] sm:$0xff]
    %v279 = vld [vmem:[#allocation3 + $0x29] sm:$0xff]
    %v280 = vld [vmem:[#allocation3 + $0x31] sm:$0xff]
    %285 = vrot.lane.b32.xlu0 %v277, 32
    %v286 = vpop.permute.xlu0 %285
    %287 = vrot.lane.b32.xlu0 %v278, 32
    %v288 = vpop.permute.xlu0 %287
    %289 = vrot.lane.b32.xlu0 %v279, 32
    %v290 = vpop.permute.xlu0 %289
    %291 = vrot.lane.b32.xlu0 %v280, 32
    %v292 = vpop.permute.xlu0 %291
    %vm297 = vcmask 392448
    %298 = vst.msk [vmem:[#allocation4] sm:$0xff] %vm297, %v286
    %299 = vst.msk [vmem:[#allocation4 + $0x8] sm:$0xff] %vm297, %v288
    %300 = vst.msk [vmem:[#allocation4 + $0x10] sm:$0xff] %vm297, %v290
    %301 = vst.msk [vmem:[#allocation4 + $0x18] sm:$0xff] %vm297, %v292
    %v302 = vld [vmem:[#allocation4] sm:$0xff]
    %v303 = vld [vmem:[#allocation4 + $0x8] sm:$0xff]
    %v304 = vld [vmem:[#allocation4 + $0x10] sm:$0xff]
    %v305 = vld [vmem:[#allocation4 + $0x18] sm:$0xff]
    %v307 = vperm.slane %v139, 0
    %309 = vmatpush.msra.mxu0 %v136
    %310 = vmatpush.msra.mxu0 %v135
    %311 = vmatpush.msra.mxu0 %v134
    %312 = vmatpush.msra.mxu0 %v133
    %313 = vmatpush.msra.mxu0 %v132
    %314 = vmatpush.msra.mxu0 %v131
    %315 = vmatpush.msra.mxu0 %v130
    %316 = vmatpush.msra.mxu0 %v129
    %317 = vmatpush.msra.mxu0 %v128
    %318 = vmatpush.msra.mxu0 %v127
    %319 = vmatpush.msra.mxu0 %v126
    %320 = vmatpush.msra.mxu0 %v125
    %321 = vmatpush.msra.mxu0 %v124
    %322 = vmatpush.msra.mxu0 %v123
    %323 = vmatpush.msra.mxu0 %v122
    %324 = vmatpush.msra.mxu0 %v121
    %325 = vmatmul.f32.gmra.mxu0 %v302
    %v326 = vpop.f32.mrf.mxu0
    %v327 = vadd.f32 %v307, %v326
    %328 = vmatmul.f32.gmra.mxu0 %v303
    %v329 = vpop.f32.mrf.mxu0
    %v330 = vadd.f32 %v307, %v329
    %331 = vmatmul.f32.gmra.mxu0 %v304
    %v332 = vpop.f32.mrf.mxu0
    %v333 = vadd.f32 %v307, %v332
    %334 = vmatmul.f32.gmra.mxu0 %v305
    %v335 = vpop.f32.mrf.mxu0
    %v336 = vadd.f32 %v307, %v335
    %337 = vdwg.mxu0
    %v338 = vmax.f32 %v327, 0.0
    %v339 = vmax.f32 %v330, 0.0
    %v340 = vmax.f32 %v333, 0.0
    %v341 = vmax.f32 %v336, 0.0
    %v342 = vld [vmem:[#allocation2 + $0x8] sm:$0xff]
    %v343 = vld [vmem:[#allocation2 + $0x10] sm:$0xff]
    %v344 = vld [vmem:[#allocation2 + $0x28] sm:$0xff]
    %v345 = vld [vmem:[#allocation2 + $0x30] sm:$0xff]
    %v346 = vld [vmem:[#allocation11] sm:$0xff]
    %v347 = vld [vmem:[#allocation11 + $0x8] sm:$0xff]
    %v348 = vld [vmem:[#allocation11 + $0x10] sm:$0xff]
    %v349 = vld [vmem:[#allocation11 + $0x18] sm:$0xff]
    %v350 = vld [vmem:[#allocation11 + $0x20] sm:$0xff]
    %v351 = vld [vmem:[#allocation11 + $0x28] sm:$0xff]
    %v352 = vld [vmem:[#allocation11 + $0x30] sm:$0xff]
    %v353 = vld [vmem:[#allocation11 + $0x38] sm:$0xff]
    %v354 = vld [vmem:[#allocation11 + $0x40] sm:$0xff]
    %v355 = vld [vmem:[#allocation11 + $0x48] sm:$0xff]
    %v356 = vld [vmem:[#allocation11 + $0x50] sm:$0xff]
    %v357 = vld [vmem:[#allocation11 + $0x58] sm:$0xff]
    %v358 = vld [vmem:[#allocation11 + $0x60] sm:$0xff]
    %v359 = vld [vmem:[#allocation11 + $0x68] sm:$0xff]
    %v360 = vld [vmem:[#allocation11 + $0x70] sm:$0xff]
    %v361 = vld [vmem:[#allocation11 + $0x78] sm:$0xff]
    %v362 = vld [vmem:[%s4] sm:$0x1]
    %v364 = vperm.slane %v362, 0
    %366 = vmatpush.msra.mxu0 %v361
    %367 = vmatpush.msra.mxu0 %v360
    %368 = vmatpush.msra.mxu0 %v359
    %369 = vmatpush.msra.mxu0 %v358
    %370 = vmatpush.msra.mxu0 %v357
    %371 = vmatpush.msra.mxu0 %v356
    %372 = vmatpush.msra.mxu0 %v355
    %373 = vmatpush.msra.mxu0 %v354
    %374 = vmatpush.msra.mxu0 %v353
    %375 = vmatpush.msra.mxu0 %v352
    %376 = vmatpush.msra.mxu0 %v351
    %377 = vmatpush.msra.mxu0 %v350
    %378 = vmatpush.msra.mxu0 %v349
    %379 = vmatpush.msra.mxu0 %v348
    %380 = vmatpush.msra.mxu0 %v347
    %381 = vmatpush.msra.mxu0 %v346
    %382 = vmatmul.f32.gmra.mxu0 %v342
    %v383 = vpop.f32.mrf.mxu0
    %v384 = vadd.f32 %v364, %v383
    %385 = vmatmul.f32.gmra.mxu0 %v343
    %v386 = vpop.f32.mrf.mxu0
    %v387 = vadd.f32 %v364, %v386
    %388 = vmatmul.f32.gmra.mxu0 %v344
    %v389 = vpop.f32.mrf.mxu0
    %v390 = vadd.f32 %v364, %v389
    %391 = vmatmul.f32.gmra.mxu0 %v345
    %v392 = vpop.f32.mrf.mxu0
    %v393 = vadd.f32 %v364, %v392
    %394 = vdwg.mxu0
    %v395 = vadd.f32 %v338, %v384
    %v396 = vadd.f32 %v339, %v387
    %v397 = vadd.f32 %v340, %v390
    %v398 = vadd.f32 %v341, %v393
    %v399 = vmax.f32 %v395, 0.0
    %v400 = vmax.f32 %v396, 0.0
    %v401 = vmax.f32 %v397, 0.0
    %v402 = vmax.f32 %v398, 0.0
    %403 = vst [vmem:[#allocation2 + $0x8] sm:$0xff] %v399
    %404 = vst [vmem:[#allocation2 + $0x10] sm:$0xff] %v400
    %405 = vst [vmem:[#allocation2 + $0x28] sm:$0xff] %v401
    %406 = vst [vmem:[#allocation2 + $0x30] sm:$0xff] %v402
    %s407 = scalar_lea.vmem [#allocation8], 256
    %v408 = vld [vmem:[%s407] sm:$0xff]
    %v409 = vld [vmem:[%s407 + $0x8] sm:$0xff]
    %v410 = vld [vmem:[%s407 + $0x10] sm:$0xff]
    %v411 = vld [vmem:[%s407 + $0x18] sm:$0xff]
    %v412 = vld [vmem:[%s407 + $0x20] sm:$0xff]
    %v413 = vld [vmem:[%s407 + $0x28] sm:$0xff]
    %v414 = vld [vmem:[%s407 + $0x30] sm:$0xff]
    %v415 = vld [vmem:[%s407 + $0x38] sm:$0xff]
    %v416 = vld [vmem:[%s407 + $0x40] sm:$0xff]
    %v417 = vld [vmem:[%s407 + $0x48] sm:$0xff]
    %v418 = vld [vmem:[%s407 + $0x50] sm:$0xff]
    %v419 = vld [vmem:[%s407 + $0x58] sm:$0xff]
    %v420 = vld [vmem:[%s407 + $0x60] sm:$0xff]
    %v421 = vld [vmem:[%s407 + $0x68] sm:$0xff]
    %v422 = vld [vmem:[%s407 + $0x70] sm:$0xff]
    %v423 = vld [vmem:[%s407 + $0x78] sm:$0xff]
    %s424 = scalar_lea.vmem [#allocation8], 384
    %v425 = vld [vmem:[%s424] sm:$0xff]
    %v426 = vld [vmem:[%s424 + $0x8] sm:$0xff]
    %v427 = vld [vmem:[%s424 + $0x10] sm:$0xff]
    %v428 = vld [vmem:[%s424 + $0x18] sm:$0xff]
    %v429 = vld [vmem:[%s424 + $0x20] sm:$0xff]
    %v430 = vld [vmem:[%s424 + $0x28] sm:$0xff]
    %v431 = vld [vmem:[%s424 + $0x30] sm:$0xff]
    %v432 = vld [vmem:[%s424 + $0x38] sm:$0xff]
    %v433 = vld [vmem:[%s424 + $0x40] sm:$0xff]
    %v434 = vld [vmem:[%s424 + $0x48] sm:$0xff]
    %v435 = vld [vmem:[%s424 + $0x50] sm:$0xff]
    %v436 = vld [vmem:[%s424 + $0x58] sm:$0xff]
    %v437 = vld [vmem:[%s424 + $0x60] sm:$0xff]
    %v438 = vld [vmem:[%s424 + $0x68] sm:$0xff]
    %v439 = vld [vmem:[%s424 + $0x70] sm:$0xff]
    %v440 = vld [vmem:[%s424 + $0x78] sm:$0xff]
    %s441 = scalar_lea.vmem [#allocation10], 2
    %v442 = vld [vmem:[%s441] sm:$0x1]
    %s443 = scalar_lea.vmem [#allocation10], 3
    %v444 = vld [vmem:[%s443] sm:$0x1]
    %v445 = vld [vmem:[#allocation2 + $0x6] sm:$0xff]
    %v446 = vld [vmem:[#allocation2 + $0xe] sm:$0xff]
    %v447 = vld [vmem:[#allocation2 + $0x26] sm:$0xff]
    %v448 = vld [vmem:[#allocation2 + $0x2e] sm:$0xff]
    %449 = vst.msk [vmem:[#allocation4] sm:$0xff] %vm247, %v445
    %450 = vst.msk [vmem:[#allocation4 + $0x8] sm:$0xff] %vm247, %v446
    %451 = vst.msk [vmem:[#allocation4 + $0x10] sm:$0xff] %vm247, %v447
    %452 = vst.msk [vmem:[#allocation4 + $0x18] sm:$0xff] %vm247, %v448
    %v453 = vld [vmem:[#allocation2 + $0x8] sm:$0xff]
    %v454 = vld [vmem:[#allocation2 + $0x10] sm:$0xff]
    %v455 = vld [vmem:[#allocation2 + $0x28] sm:$0xff]
    %v456 = vld [vmem:[#allocation2 + $0x30] sm:$0xff]
    %461 = vrot.lane.b32.xlu0 %v453, 16
    %v462 = vpop.permute.xlu0 %461
    %463 = vrot.lane.b32.xlu0 %v454, 16
    %v464 = vpop.permute.xlu0 %463
    %465 = vrot.lane.b32.xlu0 %v455, 16
    %v466 = vpop.permute.xlu0 %465
    %467 = vrot.lane.b32.xlu0 %v456, 16
    %v468 = vpop.permute.xlu0 %467
    %473 = vst.msk [vmem:[#allocation4] sm:$0xff] %vm272, %v462
    %474 = vst.msk [vmem:[#allocation4 + $0x8] sm:$0xff] %vm272, %v464
    %475 = vst.msk [vmem:[#allocation4 + $0x10] sm:$0xff] %vm272, %v466
    %476 = vst.msk [vmem:[#allocation4 + $0x18] sm:$0xff] %vm272, %v468
    %v477 = vld [vmem:[#allocation2 + $0xa] sm:$0xff]
    %v478 = vld [vmem:[#allocation2 + $0x12] sm:$0xff]
    %v479 = vld [vmem:[#allocation2 + $0x2a] sm:$0xff]
    %v480 = vld [vmem:[#allocation2 + $0x32] sm:$0xff]
    %485 = vrot.lane.b32.xlu0 %v477, 32
    %v486 = vpop.permute.xlu0 %485
    %487 = vrot.lane.b32.xlu0 %v478, 32
    %v488 = vpop.permute.xlu0 %487
    %489 = vrot.lane.b32.xlu0 %v479, 32
    %v490 = vpop.permute.xlu0 %489
    %491 = vrot.lane.b32.xlu0 %v480, 32
    %v492 = vpop.permute.xlu0 %491
    %497 = vst.msk [vmem:[#allocation4] sm:$0xff] %vm297, %v486
    %498 = vst.msk [vmem:[#allocation4 + $0x8] sm:$0xff] %vm297, %v488
    %499 = vst.msk [vmem:[#allocation4 + $0x10] sm:$0xff] %vm297, %v490
    %500 = vst.msk [vmem:[#allocation4 + $0x18] sm:$0xff] %vm297, %v492
    %v501 = vld [vmem:[#allocation4] sm:$0xff]
    %v502 = vld [vmem:[#allocation4 + $0x8] sm:$0xff]
    %v503 = vld [vmem:[#allocation4 + $0x10] sm:$0xff]
    %v504 = vld [vmem:[#allocation4 + $0x18] sm:$0xff]
    %v506 = vperm.slane %v442, 0
    %508 = vmatpush.msra.mxu0 %v423
    %509 = vmatpush.msra.mxu0 %v422
    %510 = vmatpush.msra.mxu0 %v421
    %511 = vmatpush.msra.mxu0 %v420
    %512 = vmatpush.msra.mxu0 %v419
    %513 = vmatpush.msra.mxu0 %v418
    %514 = vmatpush.msra.mxu0 %v417
    %515 = vmatpush.msra.mxu0 %v416
    %516 = vmatpush.msra.mxu0 %v415
    %517 = vmatpush.msra.mxu0 %v414
    %518 = vmatpush.msra.mxu0 %v413
    %519 = vmatpush.msra.mxu0 %v412
    %520 = vmatpush.msra.mxu0 %v411
    %521 = vmatpush.msra.mxu0 %v410
    %522 = vmatpush.msra.mxu0 %v409
    %523 = vmatpush.msra.mxu0 %v408
    %524 = vmatmul.f32.gmra.mxu0 %v501
    %v525 = vpop.f32.mrf.mxu0
    %v526 = vadd.f32 %v506, %v525
    %527 = vmatmul.f32.gmra.mxu0 %v502
    %v528 = vpop.f32.mrf.mxu0
    %v529 = vadd.f32 %v506, %v528
    %530 = vmatmul.f32.gmra.mxu0 %v503
    %v531 = vpop.f32.mrf.mxu0
    %v532 = vadd.f32 %v506, %v531
    %533 = vmatmul.f32.gmra.mxu0 %v504
    %v534 = vpop.f32.mrf.mxu0
    %v535 = vadd.f32 %v506, %v534
    %536 = vdwg.mxu0
    %v537 = vmax.f32 %v526, 0.0
    %v538 = vmax.f32 %v529, 0.0
    %v539 = vmax.f32 %v532, 0.0
    %v540 = vmax.f32 %v535, 0.0
    %541 = vst [vmem:[#allocation3 + $0x8] sm:$0xff] %v537
    %542 = vst [vmem:[#allocation3 + $0x10] sm:$0xff] %v538
    %543 = vst [vmem:[#allocation3 + $0x28] sm:$0xff] %v539
    %544 = vst [vmem:[#allocation3 + $0x30] sm:$0xff] %v540
    %v545 = vld [vmem:[#allocation3 + $0x6] sm:$0xff]
    %v546 = vld [vmem:[#allocation3 + $0xe] sm:$0xff]
    %v547 = vld [vmem:[#allocation3 + $0x26] sm:$0xff]
    %v548 = vld [vmem:[#allocation3 + $0x2e] sm:$0xff]
    %549 = vst.msk [vmem:[#allocation4] sm:$0xff] %vm247, %v545
    %550 = vst.msk [vmem:[#allocation4 + $0x8] sm:$0xff] %vm247, %v546
    %551 = vst.msk [vmem:[#allocation4 + $0x10] sm:$0xff] %vm247, %v547
    %552 = vst.msk [vmem:[#allocation4 + $0x18] sm:$0xff] %vm247, %v548
    %v553 = vld [vmem:[#allocation3 + $0x8] sm:$0xff]
    %v554 = vld [vmem:[#allocation3 + $0x10] sm:$0xff]
    %v555 = vld [vmem:[#allocation3 + $0x28] sm:$0xff]
    %v556 = vld [vmem:[#allocation3 + $0x30] sm:$0xff]
    %561 = vrot.lane.b32.xlu0 %v553, 16
    %v562 = vpop.permute.xlu0 %561
    %563 = vrot.lane.b32.xlu0 %v554, 16
    %v564 = vpop.permute.xlu0 %563
    %565 = vrot.lane.b32.xlu0 %v555, 16
    %v566 = vpop.permute.xlu0 %565
    %567 = vrot.lane.b32.xlu0 %v556, 16
    %v568 = vpop.permute.xlu0 %567
    %573 = vst.msk [vmem:[#allocation4] sm:$0xff] %vm272, %v562
    %574 = vst.msk [vmem:[#allocation4 + $0x8] sm:$0xff] %vm272, %v564
    %575 = vst.msk [vmem:[#allocation4 + $0x10] sm:$0xff] %vm272, %v566
    %576 = vst.msk [vmem:[#allocation4 + $0x18] sm:$0xff] %vm272, %v568
    %v577 = vld [vmem:[#allocation3 + $0xa] sm:$0xff]
    %v578 = vld [vmem:[#allocation3 + $0x12] sm:$0xff]
    %v579 = vld [vmem:[#allocation3 + $0x2a] sm:$0xff]
    %v580 = vld [vmem:[#allocation3 + $0x32] sm:$0xff]
    %585 = vrot.lane.b32.xlu0 %v577, 32
    %v586 = vpop.permute.xlu0 %585
    %587 = vrot.lane.b32.xlu0 %v578, 32
    %v588 = vpop.permute.xlu0 %587
    %589 = vrot.lane.b32.xlu0 %v579, 32
    %v590 = vpop.permute.xlu0 %589
    %591 = vrot.lane.b32.xlu0 %v580, 32
    %v592 = vpop.permute.xlu0 %591
    %597 = vst.msk [vmem:[#allocation4] sm:$0xff] %vm297, %v586
    %598 = vst.msk [vmem:[#allocation4 + $0x8] sm:$0xff] %vm297, %v588
    %599 = vst.msk [vmem:[#allocation4 + $0x10] sm:$0xff] %vm297, %v590
    %600 = vst.msk [vmem:[#allocation4 + $0x18] sm:$0xff] %vm297, %v592
    %v601 = vld [vmem:[#allocation4] sm:$0xff]
    %v602 = vld [vmem:[#allocation4 + $0x8] sm:$0xff]
    %v603 = vld [vmem:[#allocation4 + $0x10] sm:$0xff]
    %v604 = vld [vmem:[#allocation4 + $0x18] sm:$0xff]
    %v606 = vperm.slane %v444, 0
    %608 = vmatpush.msra.mxu0 %v440
    %609 = vmatpush.msra.mxu0 %v439
    %610 = vmatpush.msra.mxu0 %v438
    %611 = vmatpush.msra.mxu0 %v437
    %612 = vmatpush.msra.mxu0 %v436
    %613 = vmatpush.msra.mxu0 %v435
    %614 = vmatpush.msra.mxu0 %v434
    %615 = vmatpush.msra.mxu0 %v433
    %616 = vmatpush.msra.mxu0 %v432
    %617 = vmatpush.msra.mxu0 %v431
    %618 = vmatpush.msra.mxu0 %v430
    %619 = vmatpush.msra.mxu0 %v429
    %620 = vmatpush.msra.mxu0 %v428
    %621 = vmatpush.msra.mxu0 %v427
    %622 = vmatpush.msra.mxu0 %v426
    %623 = vmatpush.msra.mxu0 %v425
    %624 = vmatmul.f32.gmra.mxu0 %v601
    %v625 = vpop.f32.mrf.mxu0
    %v626 = vadd.f32 %v606, %v625
    %627 = vmatmul.f32.gmra.mxu0 %v602
    %v628 = vpop.f32.mrf.mxu0
    %v629 = vadd.f32 %v606, %v628
    %630 = vmatmul.f32.gmra.mxu0 %v603
    %v631 = vpop.f32.mrf.mxu0
    %v632 = vadd.f32 %v606, %v631
    %633 = vmatmul.f32.gmra.mxu0 %v604
    %v634 = vpop.f32.mrf.mxu0
    %v635 = vadd.f32 %v606, %v634
    %636 = vdwg.mxu0
    %v637 = vmax.f32 %v626, 0.0
    %v638 = vmax.f32 %v629, 0.0
    %v639 = vmax.f32 %v632, 0.0
    %v640 = vmax.f32 %v635, 0.0
    %v641 = vld [vmem:[#allocation2 + $0x8] sm:$0xff]
    %v642 = vld [vmem:[#allocation2 + $0x10] sm:$0xff]
    %v643 = vld [vmem:[#allocation2 + $0x28] sm:$0xff]
    %v644 = vld [vmem:[#allocation2 + $0x30] sm:$0xff]
    %v645 = vadd.f32 %v637, %v641
    %v646 = vadd.f32 %v638, %v642
    %v647 = vadd.f32 %v639, %v643
    %v648 = vadd.f32 %v640, %v644
    %v649 = vmax.f32 %v645, 0.0
    %v650 = vmax.f32 %v646, 0.0
    %v651 = vmax.f32 %v647, 0.0
    %v652 = vmax.f32 %v648, 0.0
    %653 = vst [vmem:[#allocation2 + $0x8] sm:$0xff] %v649
    %654 = vst [vmem:[#allocation2 + $0x10] sm:$0xff] %v650
    %655 = vst [vmem:[#allocation2 + $0x28] sm:$0xff] %v651
    %656 = vst [vmem:[#allocation2 + $0x30] sm:$0xff] %v652
    %v657 = vld [vmem:[#allocation2 + $0x8] sm:$0xff]
    %v658 = vld [vmem:[#allocation2 + $0x10] sm:$0xff]
    %v659 = vld [vmem:[#allocation2 + $0x28] sm:$0xff]
    %v660 = vld [vmem:[#allocation2 + $0x30] sm:$0xff]
    %s661 = scalar_lea.vmem [#allocation11], 256
    %v662 = vld [vmem:[%s661] sm:$0xff]
    %v663 = vld [vmem:[%s661 + $0x8] sm:$0xff]
    %v664 = vld [vmem:[%s661 + $0x10] sm:$0xff]
    %v665 = vld [vmem:[%s661 + $0x18] sm:$0xff]
    %v666 = vld [vmem:[%s661 + $0x20] sm:$0xff]
    %v667 = vld [vmem:[%s661 + $0x28] sm:$0xff]
    %v668 = vld [vmem:[%s661 + $0x30] sm:$0xff]
    %v669 = vld [vmem:[%s661 + $0x38] sm:$0xff]
    %v670 = vld [vmem:[%s661 + $0x40] sm:$0xff]
    %v671 = vld [vmem:[%s661 + $0x48] sm:$0xff]
    %v672 = vld [vmem:[%s661 + $0x50] sm:$0xff]
    %v673 = vld [vmem:[%s661 + $0x58] sm:$0xff]
    %v674 = vld [vmem:[%s661 + $0x60] sm:$0xff]
    %v675 = vld [vmem:[%s661 + $0x68] sm:$0xff]
    %v676 = vld [vmem:[%s661 + $0x70] sm:$0xff]
    %v677 = vld [vmem:[%s661 + $0x78] sm:$0xff]
    %s678 = scalar_lea.vmem %s4, 2
    %v679 = vld [vmem:[%s678] sm:$0x1]
    %v681 = vperm.slane %v679, 0
    %683 = vmatpush.msra.mxu0 %v677
    %684 = vmatpush.msra.mxu0 %v676
    %685 = vmatpush.msra.mxu0 %v675
    %686 = vmatpush.msra.mxu0 %v674
    %687 = vmatpush.msra.mxu0 %v673
    %688 = vmatpush.msra.mxu0 %v672
    %689 = vmatpush.msra.mxu0 %v671
    %690 = vmatpush.msra.mxu0 %v670
    %691 = vmatpush.msra.mxu0 %v669
    %692 = vmatpush.msra.mxu0 %v668
    %693 = vmatpush.msra.mxu0 %v667
    %694 = vmatpush.msra.mxu0 %v666
    %695 = vmatpush.msra.mxu0 %v665
    %696 = vmatpush.msra.mxu0 %v664
    %697 = vmatpush.msra.mxu0 %v663
    %698 = vmatpush.msra.mxu0 %v662
    %699 = vmatmul.f32.gmra.mxu0 %v657
    %v700 = vpop.f32.mrf.mxu0
    %v701 = vadd.f32 %v681, %v700
    %702 = vmatmul.f32.gmra.mxu0 %v658
    %v703 = vpop.f32.mrf.mxu0
    %v704 = vadd.f32 %v681, %v703
    %705 = vmatmul.f32.gmra.mxu0 %v659
    %v706 = vpop.f32.mrf.mxu0
    %v707 = vadd.f32 %v681, %v706
    %708 = vmatmul.f32.gmra.mxu0 %v660
    %v709 = vpop.f32.mrf.mxu0
    %v710 = vadd.f32 %v681, %v709
    %711 = vdwg.mxu0
    %712 = vst [vmem:[#allocation13] sm:$0xff] %v701
    %713 = vst [vmem:[#allocation13 + $0x8] sm:$0xff] %v704
    %714 = vst [vmem:[#allocation13 + $0x10] sm:$0xff] %v707
    %715 = vst [vmem:[#allocation13 + $0x18] sm:$0xff] %v710
    // Predicated region
    $region38: #{tpu_custom_call.1} parent=1 // pred_check
      _
    $region39: #{tpu_custom_call.1} parent=1 // pred_check_branch
      %717 = sbr.rel (0) target = $region41
    $region40: #{tpu_custom_call.1} parent=1 // pred_region
      %719 = vsyncadd [#allocation7], 0
      %s720 = sshll.u32 [#allocation13], 4
      %s721 = int_to_ptr.vmem [resolvable:$true] %s720
      %s722 = sshll.u32 %s5, 4
      %s723 = int_to_ptr.hbm [resolvable:$true] %s722
      %728 = dma.vmem_to_hbm [thread:$0]  %s721, 512, %s723, [#allocation7], 128, 128, 8
    $region41: #{tpu_custom_call.1} parent=1 // pred_fallthru
      _
    // Predicated region
    $region42: #{tpu_custom_call.1} parent=1 // pred_check
      _
    $region43: #{tpu_custom_call.1} parent=1 // pred_check_branch
      %730 = sbr.rel (0) target = $region45
    $region44: #{tpu_custom_call.1} parent=1 // pred_region
      %732 = dma.done [#allocation7], 512
    $region45: #{tpu_custom_call.1} parent=1 // pred_fallthru
      _
    %733 = vsyncpa [#allocation6], 1
    %734 = vsyncpa [#allocation9], 1
    %735 = vsyncpa [#allocation12], 1
    %736 = vsyncpa [#allocation7], 1

</llo_original>
